<compile_context>
chip_gen: v5e
topology: v5e:2x2
jax: 0.10.0
libtpu: 0.0.40
codegen_flags: <defaults>
</compile_context>

<pallas_src>
import math

import numpy as np

import jax
import jax.numpy as jnp
from jax.experimental import pallas as pl
from jax.experimental.pallas import tpu as pltpu


def _build_pe_table(d_model: int, max_len: int = 5000) -> jnp.ndarray:
    """Deterministic sinusoidal table, float64 intermediates cast to float32
    (matches the torch construction)."""
    assert d_model % 2 == 0, "PositionalEncoding requires an even d_model"
    pe = np.zeros((max_len, d_model), dtype=np.float64)
    position = np.arange(0, max_len, dtype=np.float64)[:, None]
    div_term = np.exp(np.arange(0, d_model, 2).astype(np.float64)
                      * (-math.log(10000.0) / d_model))
    pe[:, 0::2] = np.sin(position * div_term)
    pe[:, 1::2] = np.cos(position * div_term)
    return jnp.asarray(pe.astype(np.float32))        # (max_len, d_model)


def _add_pe_kernel(x_ref, pe_ref, o_ref):
    # x_ref / o_ref: (ts, tb, D).  pe_ref: (ts, D).
    # The batch broadcast happens at the add (sublane broadcast) -- no
    # materialized (ts, tb, D) pe temp, no concatenate, native dtype.
    o_ref[...] = x_ref[...] + pe_ref[...][:, None, :]


def _round_down(v: int, m: int) -> int:
    return (v // m) * m


def _round_up(v: int, m: int) -> int:
    return -(-v // m) * m


def _tpu_vmem_bytes() -> int:
    try:
        return int(pltpu.get_tpu_info().vmem_capacity_bytes)
    except Exception:
        return 64 << 20   # conservative default: v7x per-TensorCore VMEM


def positional_encoding_forward(x: jnp.ndarray, pe_table: jnp.ndarray,
                                *, donate_x: bool = False) -> jnp.ndarray:
    """Forward pass of PositionalEncoding (inference / eval mode).

    donate_x=True enables input_output_aliases={0: 0} (in-place x += pe);
    only use it under jit with a donatable x.
    """
    S, B, D = x.shape
    assert pe_table.shape[1] == D and pe_table.shape[0] >= S

    itemsize = jnp.dtype(x.dtype).itemsize
    sub = {4: 8, 2: 16, 1: 32}.get(itemsize, 8)      # sublane multiple per dtype

    # One-time cast of the table (no per-tile f32 round trip in the kernel).
    pe_cast = pe_table.astype(x.dtype)

    # --- batch tile: bound row width so wide B*D doesn't blow VMEM ----------
    lane_target = 1 << 20                            # ~1 MiB of x per s-row slab
    if B <= sub or B * D * itemsize <= lane_target:
        tb = B
    else:
        tb = _round_down(min(max(sub, lane_target // (D * itemsize)), B), sub)
        tb = max(tb, sub)

    # VMEM accounting uses the padded (sublane x lane) tile layout.
    padded_tb = _round_up(tb, sub)
    padded_d = _round_up(D, 128)
    row_vmem = padded_tb * padded_d * itemsize       # VMEM bytes per s-row of an x tile

    # --- sequence tile: largest sublane-aligned ts under the per-device target
    vmem_bytes = _tpu_vmem_bytes()
    target_bytes = min(16 << 20, max(2 << 20, vmem_bytes // 8))
    if S < sub:
        ts = S
        pe_arr = pe_cast[:S]                         # full-extent pe block (S, D)
    else:
        ts = min(max(sub, target_bytes // max(1, row_vmem)), S)
        ts = _round_down(ts, sub)
        pe_arr = pe_cast                             # S-window via index_map only

    ns = pl.cdiv(S, ts)
    nb = pl.cdiv(B, tb)

    x_tile_vmem = ts * row_vmem
    pe_tile_vmem = _round_up(ts, sub) * padded_d * itemsize
    footprint = 2 * (2 * x_tile_vmem + pe_tile_vmem)          # double-buffered in/out/pe
    vmem_limit = int(min(vmem_bytes * 3 // 4,
                         max(32 << 20, footprint + (8 << 20))))

    cost = pl.CostEstimate(
        flops=S * B * D,
        transcendentals=0,
        bytes_accessed=2 * S * B * D * itemsize + S * D * itemsize,
    )

    out = pl.pallas_call(
        _add_pe_kernel,
        out_shape=jax.ShapeDtypeStruct((S, B, D), x.dtype),
        grid=(ns, nb),
        in_specs=[
            pl.BlockSpec((ts, tb, D), lambda i, j: (i, j, 0)),   # x tile
            pl.BlockSpec((ts, D), lambda i, j: (i, 0)),          # pe tile (same S window)
        ],
        out_specs=pl.BlockSpec((ts, tb, D), lambda i, j: (i, j, 0)),
        compiler_params=pltpu.CompilerParams(
            dimension_semantics=("parallel", "parallel"),
            vmem_limit_bytes=vmem_limit,
        ),
        cost_estimate=cost,
        input_output_aliases={0: 0} if donate_x else {},
    )(x, pe_arr)

    # Dropout(p=0.1) in eval mode is identity.
    return out


if __name__ == "__main__":
    # Small shapes consistent with the module's forward: (seq, batch, d_model).
    S, B, D = 8, 2, 32
    MAX_LEN = 64  # smaller than 5000 for a fast test; same construction formula

    key = jax.random.PRNGKey(0)
    x = jax.random.normal(key, (S, B, D), dtype=jnp.float32)

    pe_table = _build_pe_table(D, MAX_LEN)

    out = positional_encoding_forward(x, pe_table)
    out = jax.block_until_ready(out)

    # Pure-JAX reference (eval-mode semantics: x + pe[:S] broadcast over batch).
    ref = x + pe_table[:S][:, None, :]
    np.testing.assert_allclose(np.asarray(out), np.asarray(ref), rtol=1e-6, atol=1e-6)

    print("KERNEL_OK")
</pallas_src>

<mosaic_0001>
module attributes {stable_mosaic.version = 11 : i64} {
  func.func @_add_pe_kernel(%arg0: i32, %arg1: i32, %arg2: memref<8x2x32xf32, #tpu.memory_space<vmem>>, %arg3: memref<8x32xf32, #tpu.memory_space<vmem>>, %arg4: memref<8x2x32xf32, #tpu.memory_space<vmem>>) attributes {dimension_semantics = [#tpu.dimension_semantics<parallel>, #tpu.dimension_semantics<parallel>], iteration_bounds = array<i64: 1, 1>, scalar_prefetch = 0 : i64, scratch_operands = 0 : i64, tpu.core_type = #tpu.core_type<tc>, window_params = [{transform_indices = @transform_0, window_bounds = array<i64: 8, 2, 32>}, {transform_indices = @transform_1, window_bounds = array<i64: 8, 32>}, {transform_indices = @transform_2, window_bounds = array<i64: 8, 2, 32>}]} {
    %c0 = arith.constant 0 : index
    %c0_0 = arith.constant 0 : index
    %c0_1 = arith.constant 0 : index
    %0 = vector.load %arg2[%c0, %c0_0, %c0_1] : memref<8x2x32xf32, #tpu.memory_space<vmem>>, vector<8x2x32xf32>
    %c0_2 = arith.constant 0 : index
    %c0_3 = arith.constant 0 : index
    %1 = vector.load %arg3[%c0_2, %c0_3] : memref<8x32xf32, #tpu.memory_space<vmem>>, vector<8x32xf32>
    %2 = vector.shape_cast %1 : vector<8x32xf32> to vector<8x1x32xf32>
    %3 = vector.broadcast %2 : vector<8x1x32xf32> to vector<8x2x32xf32>
    %4 = arith.addf %0, %3 : vector<8x2x32xf32>
    %c0_4 = arith.constant 0 : index
    %c0_5 = arith.constant 0 : index
    %c0_6 = arith.constant 0 : index
    %5 = vector.load %arg4[%c0_4, %c0_5, %c0_6] : memref<8x2x32xf32, #tpu.memory_space<vmem>>, vector<8x2x32xf32>
    tpu.vector_store %arg4[%c0_4, %c0_5, %c0_6], %4 {strides = array<i32>} : memref<8x2x32xf32, #tpu.memory_space<vmem>>, vector<8x2x32xf32>,
    return
  }
  func.func @transform_0(%arg0: i32, %arg1: i32) -> (i32, i32, i32) {
    %c0_i32 = arith.constant 0 : i32
    %c0_i32_0 = arith.constant 0 : i32
    return %arg0, %arg1, %c0_i32 : i32, i32, i32
  }
  func.func @transform_1(%arg0: i32, %arg1: i32) -> (i32, i32) {
    %c0_i32 = arith.constant 0 : i32
    %c0_i32_0 = arith.constant 0 : i32
    return %arg0, %c0_i32 : i32, i32
  }
  func.func @transform_2(%arg0: i32, %arg1: i32) -> (i32, i32, i32) {
    %c0_i32 = arith.constant 0 : i32
    %c0_i32_0 = arith.constant 0 : i32
    return %arg0, %arg1, %c0_i32 : i32, i32, i32
  }
}

</mosaic_0001>

<llo_original>
// kernel: tpu_custom_call.1
$region0: #{tpu_custom_call.1}
  #allocation0 [shape = 'u32[]', space=smem, size = 0x4, offset = 0x4, fixed_abs, tag = 'smem constant byte address 0x4 - core index']
  #allocation1 [shape = 'u32[72,128]{1,0:T(1,128)}', space=vmem, size = 0x9000, scoped, tag = 'internal scratch']
  %s0 = inlined_call_operand.vmem [shape: f32[8,2,32], index: 0, kind: input, shape index: {}]
  %s1 = inlined_call_operand.vmem [shape: f32[64,32], index: 1, kind: input, shape index: {}]
  %s2 = inlined_call_operand.hbm [shape: f32[8,2,32], index: 2, kind: output, shape index: {}]
  %s3 = sld [smem:[#allocation0]]
  $region18: #{tpu_custom_call.1} parent=0
    _
  %s5 = ssub.s32 1, %s3
  %s6 = scalar_select 0, %s5, %s3
  $region1: #{tpu_custom_call.1} parent=0
    #allocation2 [shape = 'u8[8192]{0}', space=vmem, size = 0x2000, scoped, tag = 'output window, operand 0, single buffered']
    #allocation3 [shape = 's32[1]{0}', space=sflag, size = 0x4, scoped, tag = 'scoped memory for tpu_custom_call.1']
    %7 = vsyncpa [#allocation3], 0
    // Predicated region
    $region2: #{tpu_custom_call.1} parent=1 // pred_check
      _
    $region3: #{tpu_custom_call.1} parent=1 // pred_check_branch
      %9 = sbr.rel (0) target = $region5
    $region4: #{tpu_custom_call.1} parent=1 // pred_region
      _
    $region5: #{tpu_custom_call.1} parent=1 // pred_fallthru
      _
    // Predicated region
    $region6: #{tpu_custom_call.1} parent=1 // pred_check
      _
    $region7: #{tpu_custom_call.1} parent=1 // pred_check_branch
      %11 = sbr.rel (0) target = $region9
    $region8: #{tpu_custom_call.1} parent=1 // pred_region
      _
    $region9: #{tpu_custom_call.1} parent=1 // pred_fallthru
      _
    %v12 = vld [vmem:[%s0] sm:$0x3]
    %v13 = vld [vmem:[%s0 + $0x2] sm:$0x3]
    %v14 = vld [vmem:[%s0 + $0x4] sm:$0x3]
    %v15 = vld [vmem:[%s0 + $0x6] sm:$0x3]
    %v16 = vld [vmem:[%s0 + $0x8] sm:$0x3]
    %v17 = vld [vmem:[%s0 + $0xa] sm:$0x3]
    %v18 = vld [vmem:[%s0 + $0xc] sm:$0x3]
    %v19 = vld [vmem:[%s0 + $0xe] sm:$0x3]
    %v20 = vld [vmem:[%s1] sm:$0xff]
    %v22 = vrot.slane %v20, 1
    %v23 = vrot.slane %v20, 2
    %v24 = vrot.slane %v20, 3
    %v25 = vrot.slane %v20, 4
    %v26 = vrot.slane %v20, 5
    %v27 = vrot.slane %v20, 6
    %v28 = vrot.slane %v20, 7
    %v29 = vperm.slane %v20, 0
    %v30 = vperm.slane %v22, 0
    %v31 = vperm.slane %v23, 0
    %v32 = vperm.slane %v24, 0
    %v33 = vperm.slane %v25, 0
    %v34 = vperm.slane %v26, 0
    %v35 = vperm.slane %v27, 0
    %v36 = vperm.slane %v28, 0
    %v45 = vadd.f32 %v12, %v29
    %v46 = vadd.f32 %v13, %v30
    %v47 = vadd.f32 %v14, %v31
    %v48 = vadd.f32 %v15, %v32
    %v49 = vadd.f32 %v16, %v33
    %v50 = vadd.f32 %v17, %v34
    %v51 = vadd.f32 %v18, %v35
    %v52 = vadd.f32 %v19, %v36
    %vm53 = vcmask 254976
    %54 = vst.msk [vmem:[#allocation2] sm:$0x3] %vm53, %v45
    %55 = vst.msk [vmem:[#allocation2 + $0x2] sm:$0x3] %vm53, %v46
    %56 = vst.msk [vmem:[#allocation2 + $0x4] sm:$0x3] %vm53, %v47
    %57 = vst.msk [vmem:[#allocation2 + $0x6] sm:$0x3] %vm53, %v48
    %58 = vst.msk [vmem:[#allocation2 + $0x8] sm:$0x3] %vm53, %v49
    %59 = vst.msk [vmem:[#allocation2 + $0xa] sm:$0x3] %vm53, %v50
    %60 = vst.msk [vmem:[#allocation2 + $0xc] sm:$0x3] %vm53, %v51
    %61 = vst.msk [vmem:[#allocation2 + $0xe] sm:$0x3] %vm53, %v52
    // Predicated region
    $region10: #{tpu_custom_call.1} parent=1 // pred_check
      _
    $region11: #{tpu_custom_call.1} parent=1 // pred_check_branch
      %63 = sbr.rel (0) target = $region13
    $region12: #{tpu_custom_call.1} parent=1 // pred_region
      %65 = vsyncadd [#allocation3], 0
      %s66 = sshll.u32 [#allocation2], 4
      %s67 = int_to_ptr.vmem [resolvable:$true] %s66
      %s68 = sshll.u32 %s2, 4
      %s69 = int_to_ptr.hbm [resolvable:$true] %s68
      %74 = dma.vmem_to_hbm [thread:$0]  %s67, 256, %s69, [#allocation3], 32, 32, 2
    $region13: #{tpu_custom_call.1} parent=1 // pred_fallthru
      _
    // Predicated region
    $region14: #{tpu_custom_call.1} parent=1 // pred_check
      _
    $region15: #{tpu_custom_call.1} parent=1 // pred_check_branch
      %76 = sbr.rel (0) target = $region17
    $region16: #{tpu_custom_call.1} parent=1 // pred_region
      %78 = dma.done [#allocation3], 256
    $region17: #{tpu_custom_call.1} parent=1 // pred_fallthru
      _
    %79 = vsyncpa [#allocation3], 1

</llo_original>
